<compile_context>
chip_gen: v6e
topology: v6e:2x2x1
jax: 0.10.0
libtpu: 0.0.40
codegen_flags: <defaults>
</compile_context>

<pallas_src>
import functools

import jax
import jax.numpy as jnp
from jax.experimental import pallas as pl
from jax.experimental.pallas import tpu as pltpu


# ----------------------------------------------------------------------------
# Kernels
# ----------------------------------------------------------------------------
def _loss_body(p, g, loss_type, use_log):
    """Elementwise loss values for an f32 tile (already masked if needed)."""
    if use_log:
        p = jnp.log(jnp.maximum(p, 1e-6))   # clamp(min=1e-6) then log (EUP)
        g = jnp.log(g)                      # gt unclamped (matches PyTorch)
    d = p - g
    if loss_type == 'l1':
        return jnp.abs(d)
    return d * d


def _flat_kernel(pred_ref, gt_ref, out_ref, *, inv_batch, loss_type, use_log):
    """Single-block path: block == full (R, 128) padded array, no mask."""
    p = pred_ref[...].astype(jnp.float32)
    g = gt_ref[...].astype(jnp.float32)
    val = _loss_body(p, g, loss_type, use_log)
    out_ref[0, 0] = jnp.sum(val) * inv_batch


def _grid_kernel(pred_ref, gt_ref, out_ref, acc_ref, *, steps, tr, rows,
                 loss_type, use_log, needs_mask):
    """Gridded streaming reduction.

    grid = (splits, steps):  axis 0 is "parallel" (one chunk per TensorCore
    on v7x), axis 1 is "arbitrary" (sequential reduction per chunk).
    acc_ref: (8, 128) f32 VMEM vector accumulator (pure VPU adds per tile).
    out_ref: this core's (1, 8, 128) partial-sum block, written on the last
    inner step; the wrapper does the final tiny reduce.
    """
    c = pl.program_id(0)
    i = pl.program_id(1)

    @pl.when(i == 0)
    def _():
        acc_ref[...] = jnp.zeros_like(acc_ref)

    p = pred_ref[...].astype(jnp.float32)
    g = gt_ref[...].astype(jnp.float32)

    if needs_mask:
        # Only compiled in when the grid does not tile R exactly (partial last
        # block and/or clamped duplicate block from the 2-way core split).
        # Replacing with 1.0 BEFORE the log gives exactly zero contribution.
        lb = c * steps + i                     # logical block index
        row = jax.lax.broadcasted_iota(jnp.int32, (tr, 128), 0)
        valid = (lb * tr + row) < rows
        p = jnp.where(valid, p, 1.0)
        g = jnp.where(valid, g, 1.0)

    val = _loss_body(p, g, loss_type, use_log)
    # Tile-aligned reshape (groups of 8 sublanes) -> vreg-wise adds only (VPU);
    # no per-step XLU reduce, no per-step SMEM round trip.
    acc_ref[...] += jnp.sum(val.reshape(tr // 8, 8, 128), axis=0)

    @pl.when(i == steps - 1)
    def _():
        out_ref[0] = acc_ref[...]


# ----------------------------------------------------------------------------
# Wrapper
# ----------------------------------------------------------------------------
def translation_loss(pred_scale, gt_scale, *, loss='l2', log=False,
                     block_rows=8192, num_core_splits=2):
    """Pallas equivalent of TranslationLoss(loss, log)(pred_scale, gt_scale).

    block_rows:      rows (of 128 lanes) per grid step for the gridded path.
    num_core_splits: leading "parallel" grid axis (2 uses both v7x TCs).
    """
    assert pred_scale.shape == gt_scale.shape and pred_scale.ndim == 1
    B = int(pred_scale.shape[0])
    inv_b = 1.0 / float(B)

    # Host pad (<= 127 elems) with 1.0: zero contribution for l1/l2/log, so no
    # lane masking is ever needed.  No pad at all when B % 128 == 0.
    B_pad = pl.cdiv(B, 128) * 128
    if B_pad != B:
        pred_scale = jnp.pad(pred_scale, (0, B_pad - B), constant_values=1.0)
        gt_scale = jnp.pad(gt_scale, (0, B_pad - B), constant_values=1.0)
    R = B_pad // 128
    pred2 = pred_scale.reshape(R, 128)   # sublane-packed view (free reshape)
    gt2 = gt_scale.reshape(R, 128)

    # Sublane granularity for the tile: 8 for f32, 16 for bf16, 32 for 8-bit.
    isz = min(jnp.dtype(pred_scale.dtype).itemsize,
              jnp.dtype(gt_scale.dtype).itemsize)
    sub = 8 * max(1, 4 // max(1, isz))
    tr = max(sub, (int(block_rows) // sub) * sub)

    # ---------------- single-block path (no grid, no mask) ------------------
    if R <= tr:
        kernel = functools.partial(_flat_kernel, inv_batch=inv_b,
                                   loss_type=loss, use_log=log)
        out = pl.pallas_call(
            kernel,
            out_shape=jax.ShapeDtypeStruct((1, 1), jnp.float32),
            in_specs=[
                pl.BlockSpec((R, 128), lambda: (0, 0)),   # full-array block
                pl.BlockSpec((R, 128), lambda: (0, 0)),
            ],
            out_specs=pl.BlockSpec(memory_space=pltpu.MemorySpace.SMEM),
        )(pred2, gt2)
        return out[0, 0]

    # ---------------- gridded, double-buffered streaming reduction ----------
    nblocks = pl.cdiv(R, tr)
    splits = max(1, int(num_core_splits))
    steps = pl.cdiv(nblocks, splits)
    # Static: mask only compiled in if the (splits*steps) grid over-covers R.
    needs_mask = (steps * splits * tr != R)

    def in_map(c, i):
        # Clamp so the (possibly over-allocated) last step of a split re-reads
        # the final block instead of going OOB; it is fully masked in-kernel.
        return (jnp.minimum(c * steps + i, nblocks - 1), 0)

    kernel = functools.partial(_grid_kernel, steps=steps, tr=tr, rows=R,
                               loss_type=loss, use_log=log,
                               needs_mask=needs_mask)
    partial_sums = pl.pallas_call(
        kernel,
        out_shape=jax.ShapeDtypeStruct((splits, 8, 128), jnp.float32),
        grid_spec=pltpu.PrefetchScalarGridSpec(
            num_scalar_prefetch=0,
            grid=(splits, steps),
            in_specs=[pl.BlockSpec((tr, 128), in_map),
                      pl.BlockSpec((tr, 128), in_map)],
            out_specs=pl.BlockSpec((1, 8, 128), lambda c, i: (c, 0, 0)),
            scratch_shapes=[pltpu.VMEM((8, 128), jnp.float32)],
        ),
        compiler_params=pltpu.CompilerParams(
            dimension_semantics=("parallel", "arbitrary"),
            vmem_limit_bytes=32 * 1024 * 1024),
    )(pred2, gt2)
    # Final tiny reduce (splits*8*128 floats) + 1/B fold done by XLA.
    return jnp.sum(partial_sums) * inv_b


# ----------------------------------------------------------------------------
# Self-test
# ----------------------------------------------------------------------------
if __name__ == "__main__":
    key = jax.random.PRNGKey(0)
    k1, k2, k3, k4 = jax.random.split(key, 4)

    # --- small-B flat path (module's typical usage), B = 8 ------------------
    B = 8
    pred = jax.random.uniform(k1, (B,), jnp.float32, minval=0.1, maxval=2.0)
    gt = jax.random.uniform(k2, (B,), jnp.float32, minval=0.1, maxval=2.0)

    loss_l2 = jax.block_until_ready(translation_loss(pred, gt, loss='l2', log=False))
    loss_l1 = jax.block_until_ready(translation_loss(pred, gt, loss='l1', log=False))
    loss_log = jax.block_until_ready(translation_loss(pred, gt, loss='l2', log=True))

    ref_l2 = jnp.mean((pred - gt) ** 2)
    ref_l1 = jnp.mean(jnp.abs(pred - gt))
    ref_log = jnp.mean((jnp.log(jnp.maximum(pred, 1e-6)) - jnp.log(gt)) ** 2)
    assert jnp.allclose(loss_l2, ref_l2, rtol=1e-5, atol=1e-6)
    assert jnp.allclose(loss_l1, ref_l1, rtol=1e-5, atol=1e-6)
    assert jnp.allclose(loss_log, ref_log, rtol=1e-5, atol=1e-6)
    assert not bool(jnp.isnan(loss_l2))   # host-side NaN check (PyTorch assert)

    # --- gridded path, exercised at small scale ------------------------------
    # (a) B multiple of 128 -> exact tiling check (no mask / masked split).
    B2 = 3 * 1024                              # R = 24 rows
    predL = jax.random.uniform(k3, (B2,), jnp.float32, minval=0.1, maxval=2.0)
    gtL = jax.random.uniform(k4, (B2,), jnp.float32, minval=0.1, maxval=2.0)
    g_log = jax.block_until_ready(
        translation_loss(predL, gtL, loss='l2', log=True, block_rows=8))
    ref_g = jnp.mean((jnp.log(jnp.maximum(predL, 1e-6)) - jnp.log(gtL)) ** 2)
    assert jnp.allclose(g_log, ref_g, rtol=1e-4, atol=1e-6)

    # (b) B NOT a multiple of 128 -> host pad + partial last row-block mask.
    B3 = 5000
    predM = jax.random.uniform(k3, (B3,), jnp.float32, minval=0.1, maxval=2.0)
    gtM = jax.random.uniform(k4, (B3,), jnp.float32, minval=0.1, maxval=2.0)
    g_l1 = jax.block_until_ready(
        translation_loss(predM, gtM, loss='l1', log=False, block_rows=8))
    ref_m = jnp.mean(jnp.abs(predM - gtM))
    assert jnp.allclose(g_l1, ref_m, rtol=1e-4, atol=1e-6)

    # (c) native bf16 inputs (no host f32 cast), flat and gridded.
    predB = predL.astype(jnp.bfloat16)
    gtB = gtL.astype(jnp.bfloat16)
    b_flat = jax.block_until_ready(
        translation_loss(predB[:8], gtB[:8], loss='l2', log=True))
    ref_bf = jnp.mean((jnp.log(jnp.maximum(predB[:8].astype(jnp.float32), 1e-6))
                       - jnp.log(gtB[:8].astype(jnp.float32))) ** 2)
    assert jnp.allclose(b_flat, ref_bf, rtol=1e-4, atol=1e-6)
    b_grid = jax.block_until_ready(
        translation_loss(predB, gtB, loss='l2', log=False, block_rows=16))
    ref_bg = jnp.mean((predB.astype(jnp.float32) - gtB.astype(jnp.float32)) ** 2)
    assert jnp.allclose(b_grid, ref_bg, rtol=1e-4, atol=1e-6)

    print("KERNEL_OK")
</pallas_src>

<mosaic_0001>
module attributes {stable_mosaic.version = 11 : i64} {
  func.func @_flat_kernel(%arg0: memref<1x128xf32, #tpu.memory_space<vmem>>, %arg1: memref<1x128xf32, #tpu.memory_space<vmem>>, %arg2: memref<1x1xf32, #tpu.memory_space<smem>>) attributes {dimension_semantics = [], scalar_prefetch = 0 : i64, scratch_operands = 0 : i64, tpu.core_type = #tpu.core_type<tc>} {
    %c0 = arith.constant 0 : index
    %c0_0 = arith.constant 0 : index
    %0 = vector.load %arg0[%c0, %c0_0] : memref<1x128xf32, #tpu.memory_space<vmem>>, vector<1x128xf32>
    %c0_1 = arith.constant 0 : index
    %c0_2 = arith.constant 0 : index
    %1 = vector.load %arg1[%c0_1, %c0_2] : memref<1x128xf32, #tpu.memory_space<vmem>>, vector<1x128xf32>
    %2 = arith.subf %0, %1 : vector<1x128xf32>
    %3 = arith.mulf %2, %2 : vector<1x128xf32>
    %4 = vector.shape_cast %3 : vector<1x128xf32> to vector<1x1x128xf32>
    %cst = arith.constant dense<0.000000e+00> : vector<1xf32>
    %5 = vector.multi_reduction <add>, %4, %cst [1, 2] : vector<1x1x128xf32> to vector<1xf32>
    %6 = vector.shape_cast %5 : vector<1xf32> to vector<1x1x1xf32>
    %7 = vector.extract %6[0, 0, 0] : f32 from vector<1x1x1xf32>
    %cst_3 = arith.constant 1.250000e-01 : f32
    %8 = arith.mulf %7, %cst_3 : f32
    %c0_4 = arith.constant 0 : index
    %c0_5 = arith.constant 0 : index
    %9 = memref.load %arg2[%c0_4, %c0_5] : memref<1x1xf32, #tpu.memory_space<smem>>
    memref.store %8, %arg2[%c0_4, %c0_5] : memref<1x1xf32, #tpu.memory_space<smem>>
    return
  }
}

</mosaic_0001>

<llo_original>
// kernel: tpu_custom_call.1
$region0: #{tpu_custom_call.1}
  #allocation0 [shape = 'u32[]', space=smem, size = 0x4, offset = 0x4, fixed_abs, tag = 'smem constant byte address 0x4 - core index']
  #allocation1 [shape = 'u32[144,128]{1,0:T(1,128)}', space=vmem, size = 0x12000, scoped, tag = 'internal scratch']
  %s0 = inlined_call_operand.hbm [shape: f32[1,128], index: 0, kind: input, shape index: {}]
  %s1 = inlined_call_operand.vmem [shape: f32[1,128], index: 1, kind: input, shape index: {}]
  %s2 = inlined_call_operand.hbm [shape: f32[1,1], index: 2, kind: output, shape index: {}]
  %s3 = sld [smem:[#allocation0]]
  $region22: #{tpu_custom_call.1} parent=0
    _
  %s5 = ssub.s32 1, %s3
  %s6 = scalar_select 0, %s5, %s3
  $region1: #{tpu_custom_call.1} parent=0
    #allocation2 [shape = 'u8[512]{0}', space=vmem, size = 0x400, scoped, tag = 'input window, operand 0, single buffered']
    #allocation3 [shape = 's32[1]{0}', space=sflag, size = 0x4, scoped, tag = 'scoped memory for tpu_custom_call.1']
    #allocation4 [shape = 's32[1]{0}', space=sflag, size = 0x4, scoped, tag = 'scoped memory for tpu_custom_call.1']
    #allocation5 [shape = 'u8[512]{0}', space=smem, size = 0x200, scoped, tag = 'output window, operand 0, single buffered']
    %7 = vsyncpa [#allocation3], 0
    %8 = vsyncpa [#allocation4], 0
    // Predicated region
    $region2: #{tpu_custom_call.1} parent=1 // pred_check
      _
    $region3: #{tpu_custom_call.1} parent=1 // pred_check_branch
      %10 = sbr.rel (0) target = $region5
    $region4: #{tpu_custom_call.1} parent=1 // pred_region
      %s12 = ssub.s32 16, 16
      %13 = vsyncadd [#allocation3], %s12
      %s15 = sshll.u32 [#allocation2], 4
      %s16 = int_to_ptr.vmem [resolvable:$true] %s15
      %18 = dma.hbm_to_vmem [thread:$0]  %s0, 16, %s16, [#allocation3]
    $region5: #{tpu_custom_call.1} parent=1 // pred_fallthru
      _
    // Predicated region
    $region6: #{tpu_custom_call.1} parent=1 // pred_check
      _
    $region7: #{tpu_custom_call.1} parent=1 // pred_check_branch
      %20 = sbr.rel (0) target = $region9
    $region8: #{tpu_custom_call.1} parent=1 // pred_region
      _
    $region9: #{tpu_custom_call.1} parent=1 // pred_fallthru
      _
    // Predicated region
    $region10: #{tpu_custom_call.1} parent=1 // pred_check
      _
    $region11: #{tpu_custom_call.1} parent=1 // pred_check_branch
      %22 = sbr.rel (0) target = $region13
    $region12: #{tpu_custom_call.1} parent=1 // pred_region
      %23 = dma.done [#allocation3], 16
    $region13: #{tpu_custom_call.1} parent=1 // pred_fallthru
      _
    %v24 = vld [vmem:[#allocation2] sm:$0x1]
    %v25 = vld [vmem:[%s1] sm:$0x1]
    %v26 = vsub.f32 %v24, %v25
    %v27 = vmul.f32 %v26, %v26
    %vm28 = vcmask 1040384
    %v29 = vsel %vm28, %v27, 0.0
    %30 = vadd.xlane.f32.xlu0 %v29
    %v31 = vpop.xlane.xlu0 %30
    %v32 = vrot.slane %v31, 4
    %v33 = vadd.f32 %v31, %v32
    %v34 = vrot.slane %v33, 2
    %v35 = vadd.f32 %v33, %v34
    %v36 = vrot.slane %v35, 1
    %v37 = vadd.f32 %v35, %v36
    %s38 = vtos %v37
    %s39 = smul.f32 %s38, 0.125
    %s40 = scalar_lea.smem [#allocation5], 0
    %41 = sst [smem:[%s40]] %s39
    // Predicated region
    $region14: #{tpu_custom_call.1} parent=1 // pred_check
      _
    $region15: #{tpu_custom_call.1} parent=1 // pred_check_branch
      %43 = sbr.rel (0) target = $region17
    $region16: #{tpu_custom_call.1} parent=1 // pred_region
      %s45 = ssub.s32 16, 16
      %46 = vsyncadd [#allocation4], %s45
      %49 = dma.smem_to_hbm [#allocation5], 16, %s2, [#allocation4]
    $region17: #{tpu_custom_call.1} parent=1 // pred_fallthru
      _
    // Predicated region
    $region18: #{tpu_custom_call.1} parent=1 // pred_check
      _
    $region19: #{tpu_custom_call.1} parent=1 // pred_check_branch
      %51 = sbr.rel (0) target = $region21
    $region20: #{tpu_custom_call.1} parent=1 // pred_region
      %52 = dma.done [#allocation4], 16
    $region21: #{tpu_custom_call.1} parent=1 // pred_fallthru
      _
    %53 = sfence
    %54 = vsyncpa [#allocation3], 1
    %55 = vsyncpa [#allocation4], 1

</llo_original>
